<compile_context>
chip_gen: v5e
topology: v5e:2x2
jax: 0.10.0
libtpu: 0.0.40
codegen_flags: <defaults>
</compile_context>

<pallas_src>
import math

import jax
import jax.numpy as jnp
from jax.experimental import pallas as pl
from jax.experimental.pallas import tpu as pltpu

# ---------------- model config (small, consistent with the module) ----------
B = 2          # batch
S = 8          # seq_len
D = 32         # d_model
H = 4          # num_heads
DEPTH = D // H # per-head depth


def _mhsa_kernel(x_ref, wqkv_ref, bqkv_ref, wo_ref, bo_ref, o_ref):
    """Fused QKV projection + head-batched attention + output projection.

    x_ref    : (B*S, D)   activations, batch folded into rows
    wqkv_ref : (D, 3*D)   pre-transposed [Wq.T * scale | Wk.T | Wv.T]
    bqkv_ref : (1, 3*D)   fused bias (q part pre-scaled)
    wo_ref   : (D, D)     pre-transposed output projection (Wo.T)
    bo_ref   : (1, D)
    o_ref    : (B*S, D)
    """
    x = x_ref[...]                                                   # (B*S, D)

    # Single fused projection matmul: (B*S, D) @ (D, 3D); the 1/sqrt(depth)
    # scale is already folded into the Q columns, so no per-head scale below.
    qkv = jnp.dot(x, wqkv_ref[...],
                  preferred_element_type=jnp.float32) + bqkv_ref[...]  # (B*S, 3D)

    # Build head-batched (H*B, S, DEPTH) tensors once so the attention runs as
    # TWO batched dot_generals (batch = H*B) instead of 8 tiny per-head ones.
    # Head h of q/k/v lives in columns [base + h*DEPTH : base + (h+1)*DEPTH].
    def heads(base):
        return jnp.concatenate(
            [qkv[:, base + h * DEPTH: base + (h + 1) * DEPTH].reshape(B, S, DEPTH)
             for h in range(H)],
            axis=0)                                                  # (H*B, S, DEPTH)

    qh = heads(0)
    kh = heads(D)
    vh = heads(2 * D)

    # Scores for all heads/batches in one batched matmul (contraction on the
    # last dim -> no in-kernel k transpose). Single softmax over the whole slab.
    s = jnp.einsum('bqd,bkd->bqk', qh, kh,
                   preferred_element_type=jnp.float32)               # (H*B, S, S)
    s = s - jnp.max(s, axis=-1, keepdims=True)
    e = jnp.exp(s)
    a = e / jnp.sum(e, axis=-1, keepdims=True)                       # exact softmax
    ctx = jnp.einsum('bqk,bkd->bqd', a, vh,
                     preferred_element_type=jnp.float32)             # (H*B, S, DEPTH)

    # Re-concatenate heads along lanes -> (B*S, D); identical column ordering
    # to PyTorch's permute(0,2,1,3).contiguous().view(B, S, D).
    ctx2d = jnp.concatenate(
        [ctx[h * B:(h + 1) * B].reshape(B * S, DEPTH) for h in range(H)],
        axis=1)                                                      # (B*S, D)

    # Single K=D output projection + bias; one full-slab store.
    o_ref[...] = jnp.dot(ctx2d, wo_ref[...],
                         preferred_element_type=jnp.float32) + bo_ref[...]


@jax.jit
def mhsa_pallas(x, wq, bq, wk, bk, wv, bv, wo, bo):
    scale = 1.0 / math.sqrt(DEPTH)
    # PyTorch Linear is x @ W.T + b with W = (out, in); transpose once here and
    # fuse Q/K/V (with the attention scale folded into the Q part).
    wqkv_t = jnp.concatenate([wq.T * scale, wk.T, wv.T], axis=1)     # (D, 3D)
    bqkv = jnp.concatenate([bq * scale, bk, bv], axis=1)             # (1, 3D)
    wo_t = wo.T                                                      # (D, D)
    x2d = x.reshape(B * S, D)

    vmem = pl.BlockSpec(memory_space=pltpu.MemorySpace.VMEM)
    out2d = pl.pallas_call(
        _mhsa_kernel,
        out_shape=jax.ShapeDtypeStruct((B * S, D), jnp.float32),
        # No grid: the entire working set (< 32 KiB) fits in VMEM, so the whole
        # batch is processed in one invocation (no per-step pipeline overhead,
        # no TensorCore split — pure overhead at this size).
        in_specs=[vmem, vmem, vmem, vmem, vmem],
        out_specs=vmem,
    )(x2d, wqkv_t, bqkv, wo_t, bo)
    return out2d.reshape(B, S, D)


def _reference(x, wq, bq, wk, bk, wv, bv, wo, bo):
    """Pure-JAX mirror of the PyTorch forward, for correctness checking."""
    q = x @ wq.T + bq[0]
    k = x @ wk.T + bk[0]
    v = x @ wv.T + bv[0]

    def split(t):  # (B,S,D) -> (B,H,S,depth)
        return jnp.transpose(t.reshape(B, S, H, DEPTH), (0, 2, 1, 3))

    qh, kh, vh = split(q), split(k), split(v)
    qk = jnp.einsum('bhqd,bhkd->bhqk', qh, kh) / math.sqrt(DEPTH)
    attn = jax.nn.softmax(qk, axis=-1)
    out = jnp.einsum('bhqk,bhkd->bhqd', attn, vh)
    out = jnp.transpose(out, (0, 2, 1, 3)).reshape(B, S, D)
    return out @ wo.T + bo[0]


if __name__ == "__main__":
    key = jax.random.PRNGKey(0)
    keys = jax.random.split(key, 9)

    # Deterministic synthetic parameters (PyTorch Linear shapes: (out, in))
    limit = 1.0 / math.sqrt(D)
    x = jax.random.normal(keys[0], (B, S, D), dtype=jnp.float32)
    wq = jax.random.uniform(keys[1], (D, D), jnp.float32, -limit, limit)
    wk = jax.random.uniform(keys[2], (D, D), jnp.float32, -limit, limit)
    wv = jax.random.uniform(keys[3], (D, D), jnp.float32, -limit, limit)
    wo = jax.random.uniform(keys[4], (D, D), jnp.float32, -limit, limit)
    bq = jax.random.uniform(keys[5], (1, D), jnp.float32, -limit, limit)
    bk = jax.random.uniform(keys[6], (1, D), jnp.float32, -limit, limit)
    bv = jax.random.uniform(keys[7], (1, D), jnp.float32, -limit, limit)
    bo = jax.random.uniform(keys[8], (1, D), jnp.float32, -limit, limit)

    out = mhsa_pallas(x, wq, bq, wk, bk, wv, bv, wo, bo)
    out = jax.block_until_ready(out)

    ref = _reference(x, wq, bq, wk, bk, wv, bv, wo, bo)
    assert out.shape == (B, S, D)
    # Exact softmax now -> tightened tolerance (only fp32 rounding / scale
    # folding differences remain).
    assert jnp.allclose(out, ref, atol=1e-4, rtol=1e-4), "mismatch vs reference"

    print("KERNEL_OK")
</pallas_src>

<mosaic_0001>
module attributes {stable_mosaic.version = 11 : i64} {
  func.func @_mhsa_kernel(%arg0: memref<16x32xf32, #tpu.memory_space<vmem>>, %arg1: memref<32x96xf32, #tpu.memory_space<vmem>>, %arg2: memref<1x96xf32, #tpu.memory_space<vmem>>, %arg3: memref<32x32xf32, #tpu.memory_space<vmem>>, %arg4: memref<1x32xf32, #tpu.memory_space<vmem>>, %arg5: memref<16x32xf32, #tpu.memory_space<vmem>>) attributes {dimension_semantics = [], scalar_prefetch = 0 : i64, scratch_operands = 0 : i64, tpu.core_type = #tpu.core_type<tc>} {
    %c0 = arith.constant 0 : index
    %c0_0 = arith.constant 0 : index
    %0 = vector.load %arg0[%c0, %c0_0] : memref<16x32xf32, #tpu.memory_space<vmem>>, vector<16x32xf32>
    %c0_1 = arith.constant 0 : index
    %c0_2 = arith.constant 0 : index
    %1 = vector.load %arg1[%c0_1, %c0_2] : memref<32x96xf32, #tpu.memory_space<vmem>>, vector<32x96xf32>
    %cst = arith.constant dense<0.000000e+00> : vector<16x96xf32>
    %2 = tpu.matmul %0, %1, %cst {dimension_numbers = #tpu.dot_dimension_numbers<[1], [0], [0], [1], [0, 0, 1, 1], [], []>} : vector<16x32xf32>, vector<32x96xf32>, vector<16x96xf32> -> vector<16x96xf32>
    %c0_3 = arith.constant 0 : index
    %c0_4 = arith.constant 0 : index
    %3 = vector.load %arg2[%c0_3, %c0_4] : memref<1x96xf32, #tpu.memory_space<vmem>>, vector<1x96xf32>
    %4 = vector.broadcast %3 : vector<1x96xf32> to vector<16x96xf32>
    %5 = arith.addf %2, %4 : vector<16x96xf32>
    %6 = vector.extract_strided_slice %5 {offsets = [0, 0], sizes = [16, 8], strides = [1, 1]} : vector<16x96xf32> to vector<16x8xf32>
    %7 = vector.shape_cast %6 : vector<16x8xf32> to vector<2x8x8xf32>
    %8 = vector.extract_strided_slice %5 {offsets = [0, 8], sizes = [16, 8], strides = [1, 1]} : vector<16x96xf32> to vector<16x8xf32>
    %9 = vector.shape_cast %8 : vector<16x8xf32> to vector<2x8x8xf32>
    %10 = vector.extract_strided_slice %5 {offsets = [0, 16], sizes = [16, 8], strides = [1, 1]} : vector<16x96xf32> to vector<16x8xf32>
    %11 = vector.shape_cast %10 : vector<16x8xf32> to vector<2x8x8xf32>
    %12 = vector.extract_strided_slice %5 {offsets = [0, 24], sizes = [16, 8], strides = [1, 1]} : vector<16x96xf32> to vector<16x8xf32>
    %13 = vector.shape_cast %12 : vector<16x8xf32> to vector<2x8x8xf32>
    %14 = tpu.concatenate %7, %9, %11, %13 in 0 : vector<2x8x8xf32>, vector<2x8x8xf32>, vector<2x8x8xf32>, vector<2x8x8xf32> -> vector<8x8x8xf32>
    %15 = vector.extract_strided_slice %5 {offsets = [0, 32], sizes = [16, 8], strides = [1, 1]} : vector<16x96xf32> to vector<16x8xf32>
    %16 = vector.shape_cast %15 : vector<16x8xf32> to vector<2x8x8xf32>
    %17 = vector.extract_strided_slice %5 {offsets = [0, 40], sizes = [16, 8], strides = [1, 1]} : vector<16x96xf32> to vector<16x8xf32>
    %18 = vector.shape_cast %17 : vector<16x8xf32> to vector<2x8x8xf32>
    %19 = vector.extract_strided_slice %5 {offsets = [0, 48], sizes = [16, 8], strides = [1, 1]} : vector<16x96xf32> to vector<16x8xf32>
    %20 = vector.shape_cast %19 : vector<16x8xf32> to vector<2x8x8xf32>
    %21 = vector.extract_strided_slice %5 {offsets = [0, 56], sizes = [16, 8], strides = [1, 1]} : vector<16x96xf32> to vector<16x8xf32>
    %22 = vector.shape_cast %21 : vector<16x8xf32> to vector<2x8x8xf32>
    %23 = tpu.concatenate %16, %18, %20, %22 in 0 : vector<2x8x8xf32>, vector<2x8x8xf32>, vector<2x8x8xf32>, vector<2x8x8xf32> -> vector<8x8x8xf32>
    %24 = vector.extract_strided_slice %5 {offsets = [0, 64], sizes = [16, 8], strides = [1, 1]} : vector<16x96xf32> to vector<16x8xf32>
    %25 = vector.shape_cast %24 : vector<16x8xf32> to vector<2x8x8xf32>
    %26 = vector.extract_strided_slice %5 {offsets = [0, 72], sizes = [16, 8], strides = [1, 1]} : vector<16x96xf32> to vector<16x8xf32>
    %27 = vector.shape_cast %26 : vector<16x8xf32> to vector<2x8x8xf32>
    %28 = vector.extract_strided_slice %5 {offsets = [0, 80], sizes = [16, 8], strides = [1, 1]} : vector<16x96xf32> to vector<16x8xf32>
    %29 = vector.shape_cast %28 : vector<16x8xf32> to vector<2x8x8xf32>
    %30 = vector.extract_strided_slice %5 {offsets = [0, 88], sizes = [16, 8], strides = [1, 1]} : vector<16x96xf32> to vector<16x8xf32>
    %31 = vector.shape_cast %30 : vector<16x8xf32> to vector<2x8x8xf32>
    %32 = tpu.concatenate %25, %27, %29, %31 in 0 : vector<2x8x8xf32>, vector<2x8x8xf32>, vector<2x8x8xf32>, vector<2x8x8xf32> -> vector<8x8x8xf32>
    "tpu.trace_start"() <{level = 10 : i32, message = "bqd,bkd->bqk"}> : () -> ()
    %cst_5 = arith.constant dense<0.000000e+00> : vector<8x8x8xf32>
    %33 = tpu.matmul %14, %23, %cst_5 {dimension_numbers = #tpu.dot_dimension_numbers<[2], [2], [1], [1], [0, 0, 0, 1, 1, 1], [0], [0]>} : vector<8x8x8xf32>, vector<8x8x8xf32>, vector<8x8x8xf32> -> vector<8x8x8xf32>
    "tpu.trace_stop"() : () -> ()
    %cst_6 = arith.constant dense<0xFF800000> : vector<8x8xf32>
    %34 = vector.multi_reduction <maximumf>, %33, %cst_6 [2] : vector<8x8x8xf32> to vector<8x8xf32>
    %35 = vector.shape_cast %34 : vector<8x8xf32> to vector<8x8x1xf32>
    %36 = vector.broadcast %35 : vector<8x8x1xf32> to vector<8x8x8xf32>
    %37 = arith.subf %33, %36 : vector<8x8x8xf32>
    %38 = math.exp %37 : vector<8x8x8xf32>
    %cst_7 = arith.constant dense<0.000000e+00> : vector<8x8xf32>
    %39 = vector.multi_reduction <add>, %38, %cst_7 [2] : vector<8x8x8xf32> to vector<8x8xf32>
    %40 = vector.shape_cast %39 : vector<8x8xf32> to vector<8x8x1xf32>
    %41 = vector.broadcast %40 : vector<8x8x1xf32> to vector<8x8x8xf32>
    %42 = arith.divf %38, %41 : vector<8x8x8xf32>
    "tpu.trace_start"() <{level = 10 : i32, message = "bqk,bkd->bqd"}> : () -> ()
    %cst_8 = arith.constant dense<0.000000e+00> : vector<8x8x8xf32>
    %43 = tpu.matmul %42, %32, %cst_8 {dimension_numbers = #tpu.dot_dimension_numbers<[2], [1], [1], [2], [0, 0, 0, 1, 1, 2], [0], [0]>} : vector<8x8x8xf32>, vector<8x8x8xf32>, vector<8x8x8xf32> -> vector<8x8x8xf32>
    "tpu.trace_stop"() : () -> ()
    %44 = vector.extract_strided_slice %43 {offsets = [0, 0, 0], sizes = [2, 8, 8], strides = [1, 1, 1]} : vector<8x8x8xf32> to vector<2x8x8xf32>
    %45 = vector.shape_cast %44 : vector<2x8x8xf32> to vector<16x8xf32>
    %46 = vector.extract_strided_slice %43 {offsets = [2, 0, 0], sizes = [2, 8, 8], strides = [1, 1, 1]} : vector<8x8x8xf32> to vector<2x8x8xf32>
    %47 = vector.shape_cast %46 : vector<2x8x8xf32> to vector<16x8xf32>
    %48 = vector.extract_strided_slice %43 {offsets = [4, 0, 0], sizes = [2, 8, 8], strides = [1, 1, 1]} : vector<8x8x8xf32> to vector<2x8x8xf32>
    %49 = vector.shape_cast %48 : vector<2x8x8xf32> to vector<16x8xf32>
    %50 = vector.extract_strided_slice %43 {offsets = [6, 0, 0], sizes = [2, 8, 8], strides = [1, 1, 1]} : vector<8x8x8xf32> to vector<2x8x8xf32>
    %51 = vector.shape_cast %50 : vector<2x8x8xf32> to vector<16x8xf32>
    %52 = tpu.concatenate %45, %47, %49, %51 in 1 : vector<16x8xf32>, vector<16x8xf32>, vector<16x8xf32>, vector<16x8xf32> -> vector<16x32xf32>
    %c0_9 = arith.constant 0 : index
    %c0_10 = arith.constant 0 : index
    %53 = vector.load %arg3[%c0_9, %c0_10] : memref<32x32xf32, #tpu.memory_space<vmem>>, vector<32x32xf32>
    %cst_11 = arith.constant dense<0.000000e+00> : vector<16x32xf32>
    %54 = tpu.matmul %52, %53, %cst_11 {dimension_numbers = #tpu.dot_dimension_numbers<[1], [0], [0], [1], [0, 0, 1, 1], [], []>} : vector<16x32xf32>, vector<32x32xf32>, vector<16x32xf32> -> vector<16x32xf32>
    %c0_12 = arith.constant 0 : index
    %c0_13 = arith.constant 0 : index
    %55 = vector.load %arg4[%c0_12, %c0_13] : memref<1x32xf32, #tpu.memory_space<vmem>>, vector<1x32xf32>
    %56 = vector.broadcast %55 : vector<1x32xf32> to vector<16x32xf32>
    %57 = arith.addf %54, %56 : vector<16x32xf32>
    %c0_14 = arith.constant 0 : index
    %c0_15 = arith.constant 0 : index
    %58 = vector.load %arg5[%c0_14, %c0_15] : memref<16x32xf32, #tpu.memory_space<vmem>>, vector<16x32xf32>
    tpu.vector_store %arg5[%c0_14, %c0_15], %57 {strides = array<i32>} : memref<16x32xf32, #tpu.memory_space<vmem>>, vector<16x32xf32>,
    return
  }
}

</mosaic_0001>

<llo_original>
// kernel: mhsa_pallas.1
$region0: #{mhsa_pallas.1}
  #allocation0 [shape = 'u32[]', space=smem, size = 0x4, offset = 0x4, fixed_abs, tag = 'smem constant byte address 0x4 - core index']
  #allocation1 [shape = 'u32[72,128]{1,0:T(1,128)}', space=vmem, size = 0x9000, scoped, tag = 'internal scratch']
  %s0 = inlined_call_operand.vmem [shape: f32[16,32], index: 0, kind: input, shape index: {}]
  %s1 = inlined_call_operand.vmem [shape: f32[32,96], index: 1, kind: input, shape index: {}]
  %s2 = inlined_call_operand.vmem [shape: f32[1,96], index: 2, kind: input, shape index: {}]
  %s3 = inlined_call_operand.vmem [shape: f32[32,32], index: 3, kind: input, shape index: {}]
  %s4 = inlined_call_operand.vmem [shape: f32[1,32], index: 4, kind: input, shape index: {}]
  %s5 = inlined_call_operand.hbm [shape: f32[16,32], index: 5, kind: output, shape index: {}]
  %s6 = sld [smem:[#allocation0]]
  $region30: #{mhsa_pallas.1} parent=0
    _
  %s8 = ssub.s32 1, %s6
  %s9 = scalar_select 0, %s8, %s6
  $region1: #{mhsa_pallas.1} parent=0
    #allocation2 [shape = 'u8[8192]{0}', space=vmem, size = 0x2000, scoped, tag = 'output window, operand 0, single buffered']
    #allocation3 [shape = 's32[1]{0}', space=sflag, size = 0x4, scoped, tag = 'scoped memory for mhsa_pallas.1']
    %10 = vsyncpa [#allocation3], 0
    // Predicated region
    $region2: #{mhsa_pallas.1} parent=1 // pred_check
      _
    $region3: #{mhsa_pallas.1} parent=1 // pred_check_branch
      %12 = sbr.rel (0) target = $region5
    $region4: #{mhsa_pallas.1} parent=1 // pred_region
      _
    $region5: #{mhsa_pallas.1} parent=1 // pred_fallthru
      _
    // Predicated region
    $region6: #{mhsa_pallas.1} parent=1 // pred_check
      _
    $region7: #{mhsa_pallas.1} parent=1 // pred_check_branch
      %14 = sbr.rel (0) target = $region9
    $region8: #{mhsa_pallas.1} parent=1 // pred_region
      _
    $region9: #{mhsa_pallas.1} parent=1 // pred_fallthru
      _
    // Predicated region
    $region10: #{mhsa_pallas.1} parent=1 // pred_check
      _
    $region11: #{mhsa_pallas.1} parent=1 // pred_check_branch
      %16 = sbr.rel (0) target = $region13
    $region12: #{mhsa_pallas.1} parent=1 // pred_region
      _
    $region13: #{mhsa_pallas.1} parent=1 // pred_fallthru
      _
    // Predicated region
    $region14: #{mhsa_pallas.1} parent=1 // pred_check
      _
    $region15: #{mhsa_pallas.1} parent=1 // pred_check_branch
      %18 = sbr.rel (0) target = $region17
    $region16: #{mhsa_pallas.1} parent=1 // pred_region
      _
    $region17: #{mhsa_pallas.1} parent=1 // pred_fallthru
      _
    // Predicated region
    $region18: #{mhsa_pallas.1} parent=1 // pred_check
      _
    $region19: #{mhsa_pallas.1} parent=1 // pred_check_branch
      %20 = sbr.rel (0) target = $region21
    $region20: #{mhsa_pallas.1} parent=1 // pred_region
      _
    $region21: #{mhsa_pallas.1} parent=1 // pred_fallthru
      _
    %v21 = vld [vmem:[%s0] sm:$0xff]
    %v22 = vld [vmem:[%s0 + $0x8] sm:$0xff]
    %v23 = vld [vmem:[%s1] sm:$0xff]
    %v24 = vld [vmem:[%s1 + $0x8] sm:$0xff]
    %v25 = vld [vmem:[%s1 + $0x10] sm:$0xff]
    %v26 = vld [vmem:[%s1 + $0x18] sm:$0xff]
    %v27 = vld [vmem:[%s2] sm:$0x1]
    %v29 = vperm.slane %v27, 0
    %vm31 = vcmask 261120
    %v33 = vsel %vm31, %v21, 0
    %v36 = vsel %vm31, %v22, 0
    %38 = vmatpush.msra.mxu0 0.0
    %39 = vmatpush.msra.mxu0 0.0
    %40 = vmatpush.msra.mxu0 0.0
    %41 = vmatpush.msra.mxu0 0.0
    %42 = vmatpush.msra.mxu0 0.0
    %43 = vmatpush.msra.mxu0 0.0
    %44 = vmatpush.msra.mxu0 0.0
    %45 = vmatpush.msra.mxu0 0.0
    %46 = vmatpush.msra.mxu0 0.0
    %47 = vmatpush.msra.mxu0 0.0
    %48 = vmatpush.msra.mxu0 0.0
    %49 = vmatpush.msra.mxu0 0.0
    %50 = vmatpush.msra.mxu0 %v26
    %51 = vmatpush.msra.mxu0 %v25
    %52 = vmatpush.msra.mxu0 %v24
    %53 = vmatpush.msra.mxu0 %v23
    %54 = vmatmul.f32.gmra.mxu0 %v33
    %v55 = vpop.f32.mrf.mxu0
    %v56 = vadd.f32 %v29, %v55
    %57 = vmatmul.f32.gmra.mxu0 %v36
    %v58 = vpop.f32.mrf.mxu0
    %v59 = vadd.f32 %v29, %v58
    %60 = vdwg.mxu0
    %63 = vrot.lane.b32.xlu0 %v56, 120
    %v64 = vpop.permute.xlu0 %63
    %65 = vrot.lane.b32.xlu0 %v59, 120
    %v66 = vpop.permute.xlu0 %65
    %67 = vrot.lane.b32.xlu0 %v56, 112
    %v68 = vpop.permute.xlu0 %67
    %69 = vrot.lane.b32.xlu0 %v59, 112
    %v70 = vpop.permute.xlu0 %69
    %71 = vrot.lane.b32.xlu0 %v56, 104
    %v72 = vpop.permute.xlu0 %71
    %73 = vrot.lane.b32.xlu0 %v59, 104
    %v74 = vpop.permute.xlu0 %73
    %75 = vrot.lane.b32.xlu0 %v56, 96
    %v76 = vpop.permute.xlu0 %75
    %vm77 = vcmask 64512
    %v78 = vsel %vm77, %v56, 0
    %v80 = vsel %vm77, %v76, 0
    %82 = vmatpush.xpose.msra.mxu0 0.0
    %83 = vmatpush.xpose.msra.mxu0 0.0
    %84 = vmatpush.xpose.msra.mxu0 0.0
    %85 = vmatpush.xpose.msra.mxu0 0.0
    %86 = vmatpush.xpose.msra.mxu0 0.0
    %87 = vmatpush.xpose.msra.mxu0 0.0
    %88 = vmatpush.xpose.msra.mxu0 0.0
    %89 = vmatpush.xpose.msra.mxu0 0.0
    %90 = vmatpush.xpose.msra.mxu0 0.0
    %91 = vmatpush.xpose.msra.mxu0 0.0
    %92 = vmatpush.xpose.msra.mxu0 0.0
    %93 = vmatpush.xpose.msra.mxu0 0.0
    %94 = vmatpush.xpose.msra.mxu0 0.0
    %95 = vmatpush.xpose.msra.mxu0 0.0
    %96 = vmatpush.xpose.msra.mxu0 0.0
    %97 = vmatpush.xpose.msra.mxu0 %v80
    %98 = vmatmul.f32.gmra.mxu0 %v78
    %v99 = vpop.f32.mrf.mxu0
    %v100 = vadd.f32 0.0, %v99
    %101 = vdwg.mxu0
    %102 = vrot.lane.b32.xlu0 %v59, 96
    %v103 = vpop.permute.xlu0 %102
    %v104 = vsel %vm77, %v59, 0
    %v106 = vsel %vm77, %v103, 0
    %108 = vmatpush.xpose.msra.mxu0 0.0
    %109 = vmatpush.xpose.msra.mxu0 0.0
    %110 = vmatpush.xpose.msra.mxu0 0.0
    %111 = vmatpush.xpose.msra.mxu0 0.0
    %112 = vmatpush.xpose.msra.mxu0 0.0
    %113 = vmatpush.xpose.msra.mxu0 0.0
    %114 = vmatpush.xpose.msra.mxu0 0.0
    %115 = vmatpush.xpose.msra.mxu0 0.0
    %116 = vmatpush.xpose.msra.mxu0 0.0
    %117 = vmatpush.xpose.msra.mxu0 0.0
    %118 = vmatpush.xpose.msra.mxu0 0.0
    %119 = vmatpush.xpose.msra.mxu0 0.0
    %120 = vmatpush.xpose.msra.mxu0 0.0
    %121 = vmatpush.xpose.msra.mxu0 0.0
    %122 = vmatpush.xpose.msra.mxu0 0.0
    %123 = vmatpush.xpose.msra.mxu0 %v106
    %124 = vmatmul.f32.gmra.mxu0 %v104
    %v125 = vpop.f32.mrf.mxu0
    %v126 = vadd.f32 0.0, %v125
    %127 = vdwg.mxu0
    %128 = vrot.lane.b32.xlu0 %v64, 96
    %v129 = vpop.permute.xlu0 %128
    %v130 = vsel %vm77, %v64, 0
    %v132 = vsel %vm77, %v129, 0
    %134 = vmatpush.xpose.msra.mxu0 0.0
    %135 = vmatpush.xpose.msra.mxu0 0.0
    %136 = vmatpush.xpose.msra.mxu0 0.0
    %137 = vmatpush.xpose.msra.mxu0 0.0
    %138 = vmatpush.xpose.msra.mxu0 0.0
    %139 = vmatpush.xpose.msra.mxu0 0.0
    %140 = vmatpush.xpose.msra.mxu0 0.0
    %141 = vmatpush.xpose.msra.mxu0 0.0
    %142 = vmatpush.xpose.msra.mxu0 0.0
    %143 = vmatpush.xpose.msra.mxu0 0.0
    %144 = vmatpush.xpose.msra.mxu0 0.0
    %145 = vmatpush.xpose.msra.mxu0 0.0
    %146 = vmatpush.xpose.msra.mxu0 0.0
    %147 = vmatpush.xpose.msra.mxu0 0.0
    %148 = vmatpush.xpose.msra.mxu0 0.0
    %149 = vmatpush.xpose.msra.mxu0 %v132
    %150 = vmatmul.f32.gmra.mxu0 %v130
    %v151 = vpop.f32.mrf.mxu0
    %v152 = vadd.f32 0.0, %v151
    %153 = vdwg.mxu0
    %154 = vrot.lane.b32.xlu0 %v66, 96
    %v155 = vpop.permute.xlu0 %154
    %v156 = vsel %vm77, %v66, 0
    %v158 = vsel %vm77, %v155, 0
    %160 = vmatpush.xpose.msra.mxu0 0.0
    %161 = vmatpush.xpose.msra.mxu0 0.0
    %162 = vmatpush.xpose.msra.mxu0 0.0
    %163 = vmatpush.xpose.msra.mxu0 0.0
    %164 = vmatpush.xpose.msra.mxu0 0.0
    %165 = vmatpush.xpose.msra.mxu0 0.0
    %166 = vmatpush.xpose.msra.mxu0 0.0
    %167 = vmatpush.xpose.msra.mxu0 0.0
    %168 = vmatpush.xpose.msra.mxu0 0.0
    %169 = vmatpush.xpose.msra.mxu0 0.0
    %170 = vmatpush.xpose.msra.mxu0 0.0
    %171 = vmatpush.xpose.msra.mxu0 0.0
    %172 = vmatpush.xpose.msra.mxu0 0.0
    %173 = vmatpush.xpose.msra.mxu0 0.0
    %174 = vmatpush.xpose.msra.mxu0 0.0
    %175 = vmatpush.xpose.msra.mxu0 %v158
    %176 = vmatmul.f32.gmra.mxu0 %v156
    %v177 = vpop.f32.mrf.mxu0
    %v178 = vadd.f32 0.0, %v177
    %179 = vdwg.mxu0
    %180 = vrot.lane.b32.xlu0 %v68, 96
    %v181 = vpop.permute.xlu0 %180
    %v182 = vsel %vm77, %v68, 0
    %v184 = vsel %vm77, %v181, 0
    %186 = vmatpush.xpose.msra.mxu0 0.0
    %187 = vmatpush.xpose.msra.mxu0 0.0
    %188 = vmatpush.xpose.msra.mxu0 0.0
    %189 = vmatpush.xpose.msra.mxu0 0.0
    %190 = vmatpush.xpose.msra.mxu0 0.0
    %191 = vmatpush.xpose.msra.mxu0 0.0
    %192 = vmatpush.xpose.msra.mxu0 0.0
    %193 = vmatpush.xpose.msra.mxu0 0.0
    %194 = vmatpush.xpose.msra.mxu0 0.0
    %195 = vmatpush.xpose.msra.mxu0 0.0
    %196 = vmatpush.xpose.msra.mxu0 0.0
    %197 = vmatpush.xpose.msra.mxu0 0.0
    %198 = vmatpush.xpose.msra.mxu0 0.0
    %199 = vmatpush.xpose.msra.mxu0 0.0
    %200 = vmatpush.xpose.msra.mxu0 0.0
    %201 = vmatpush.xpose.msra.mxu0 %v184
    %202 = vmatmul.f32.gmra.mxu0 %v182
    %v203 = vpop.f32.mrf.mxu0
    %v204 = vadd.f32 0.0, %v203
    %205 = vdwg.mxu0
    %206 = vrot.lane.b32.xlu0 %v70, 96
    %v207 = vpop.permute.xlu0 %206
    %v208 = vsel %vm77, %v70, 0
    %v210 = vsel %vm77, %v207, 0
    %212 = vmatpush.xpose.msra.mxu0 0.0
    %213 = vmatpush.xpose.msra.mxu0 0.0
    %214 = vmatpush.xpose.msra.mxu0 0.0
    %215 = vmatpush.xpose.msra.mxu0 0.0
    %216 = vmatpush.xpose.msra.mxu0 0.0
    %217 = vmatpush.xpose.msra.mxu0 0.0
    %218 = vmatpush.xpose.msra.mxu0 0.0
    %219 = vmatpush.xpose.msra.mxu0 0.0
    %220 = vmatpush.xpose.msra.mxu0 0.0
    %221 = vmatpush.xpose.msra.mxu0 0.0
    %222 = vmatpush.xpose.msra.mxu0 0.0
    %223 = vmatpush.xpose.msra.mxu0 0.0
    %224 = vmatpush.xpose.msra.mxu0 0.0
    %225 = vmatpush.xpose.msra.mxu0 0.0
    %226 = vmatpush.xpose.msra.mxu0 0.0
    %227 = vmatpush.xpose.msra.mxu0 %v210
    %228 = vmatmul.f32.gmra.mxu0 %v208
    %v229 = vpop.f32.mrf.mxu0
    %v230 = vadd.f32 0.0, %v229
    %231 = vdwg.mxu0
    %232 = vrot.lane.b32.xlu0 %v72, 96
    %v233 = vpop.permute.xlu0 %232
    %v234 = vsel %vm77, %v72, 0
    %v236 = vsel %vm77, %v233, 0
    %238 = vmatpush.xpose.msra.mxu0 0.0
    %239 = vmatpush.xpose.msra.mxu0 0.0
    %240 = vmatpush.xpose.msra.mxu0 0.0
    %241 = vmatpush.xpose.msra.mxu0 0.0
    %242 = vmatpush.xpose.msra.mxu0 0.0
    %243 = vmatpush.xpose.msra.mxu0 0.0
    %244 = vmatpush.xpose.msra.mxu0 0.0
    %245 = vmatpush.xpose.msra.mxu0 0.0
    %246 = vmatpush.xpose.msra.mxu0 0.0
    %247 = vmatpush.xpose.msra.mxu0 0.0
    %248 = vmatpush.xpose.msra.mxu0 0.0
    %249 = vmatpush.xpose.msra.mxu0 0.0
    %250 = vmatpush.xpose.msra.mxu0 0.0
    %251 = vmatpush.xpose.msra.mxu0 0.0
    %252 = vmatpush.xpose.msra.mxu0 0.0
    %253 = vmatpush.xpose.msra.mxu0 %v236
    %254 = vmatmul.f32.gmra.mxu0 %v234
    %v255 = vpop.f32.mrf.mxu0
    %v256 = vadd.f32 0.0, %v255
    %257 = vdwg.mxu0
    %258 = vrot.lane.b32.xlu0 %v74, 96
    %v259 = vpop.permute.xlu0 %258
    %v260 = vsel %vm77, %v74, 0
    %v262 = vsel %vm77, %v259, 0
    %264 = vmatpush.xpose.msra.mxu0 0.0
    %265 = vmatpush.xpose.msra.mxu0 0.0
    %266 = vmatpush.xpose.msra.mxu0 0.0
    %267 = vmatpush.xpose.msra.mxu0 0.0
    %268 = vmatpush.xpose.msra.mxu0 0.0
    %269 = vmatpush.xpose.msra.mxu0 0.0
    %270 = vmatpush.xpose.msra.mxu0 0.0
    %271 = vmatpush.xpose.msra.mxu0 0.0
    %272 = vmatpush.xpose.msra.mxu0 0.0
    %273 = vmatpush.xpose.msra.mxu0 0.0
    %274 = vmatpush.xpose.msra.mxu0 0.0
    %275 = vmatpush.xpose.msra.mxu0 0.0
    %276 = vmatpush.xpose.msra.mxu0 0.0
    %277 = vmatpush.xpose.msra.mxu0 0.0
    %278 = vmatpush.xpose.msra.mxu0 0.0
    %279 = vmatpush.xpose.msra.mxu0 %v262
    %280 = vmatmul.f32.gmra.mxu0 %v260
    %v281 = vpop.f32.mrf.mxu0
    %v282 = vadd.f32 0.0, %v281
    %283 = vdwg.mxu0
    %v284 = vsel %vm77, %v100, -inf
    %285 = vmax.xlane.f32.xlu0 %v284
    %v286 = vpop.xlane.xlu0 %285
    %v287 = vsel %vm77, %v126, -inf
    %288 = vmax.xlane.f32.xlu0 %v287
    %v289 = vpop.xlane.xlu0 %288
    %v290 = vsel %vm77, %v152, -inf
    %291 = vmax.xlane.f32.xlu0 %v290
    %v292 = vpop.xlane.xlu0 %291
    %v293 = vsel %vm77, %v178, -inf
    %294 = vmax.xlane.f32.xlu0 %v293
    %v295 = vpop.xlane.xlu0 %294
    %v296 = vsel %vm77, %v204, -inf
    %297 = vmax.xlane.f32.xlu0 %v296
    %v298 = vpop.xlane.xlu0 %297
    %v299 = vsel %vm77, %v230, -inf
    %300 = vmax.xlane.f32.xlu0 %v299
    %v301 = vpop.xlane.xlu0 %300
    %v302 = vsel %vm77, %v256, -inf
    %303 = vmax.xlane.f32.xlu0 %v302
    %v304 = vpop.xlane.xlu0 %303
    %v305 = vsel %vm77, %v282, -inf
    %306 = vmax.xlane.f32.xlu0 %v305
    %v307 = vpop.xlane.xlu0 %306
    %v308 = vsub.f32 %v100, %v286
    %v309 = vsub.f32 %v126, %v289
    %v310 = vsub.f32 %v152, %v292
    %v311 = vsub.f32 %v178, %v295
    %v312 = vsub.f32 %v204, %v298
    %v313 = vsub.f32 %v230, %v301
    %v314 = vsub.f32 %v256, %v304
    %v315 = vsub.f32 %v282, %v307
    %v316 = vmul.f32 %v308, 1.442695
    %v317 = vpow.pop %v316
    %v318 = vmul.f32 %v309, 1.442695
    %v319 = vpow.pop %v318
    %v320 = vmul.f32 %v310, 1.442695
    %v321 = vpow.pop %v320
    %v322 = vmul.f32 %v311, 1.442695
    %v323 = vpow.pop %v322
    %v324 = vmul.f32 %v312, 1.442695
    %v325 = vpow.pop %v324
    %v326 = vmul.f32 %v313, 1.442695
    %v327 = vpow.pop %v326
    %v328 = vmul.f32 %v314, 1.442695
    %v329 = vpow.pop %v328
    %v330 = vmul.f32 %v315, 1.442695
    %v331 = vpow.pop %v330
    %v332 = vsel %vm77, %v317, 0.0
    %333 = vadd.xlane.f32.xlu0 %v332
    %v334 = vpop.xlane.xlu0 %333
    %v335 = vsel %vm77, %v319, 0.0
    %336 = vadd.xlane.f32.xlu0 %v335
    %v337 = vpop.xlane.xlu0 %336
    %v338 = vsel %vm77, %v321, 0.0
    %339 = vadd.xlane.f32.xlu0 %v338
    %v340 = vpop.xlane.xlu0 %339
    %v341 = vsel %vm77, %v323, 0.0
    %342 = vadd.xlane.f32.xlu0 %v341
    %v343 = vpop.xlane.xlu0 %342
    %v344 = vsel %vm77, %v325, 0.0
    %345 = vadd.xlane.f32.xlu0 %v344
    %v346 = vpop.xlane.xlu0 %345
    %v347 = vsel %vm77, %v327, 0.0
    %348 = vadd.xlane.f32.xlu0 %v347
    %v349 = vpop.xlane.xlu0 %348
    %v350 = vsel %vm77, %v329, 0.0
    %351 = vadd.xlane.f32.xlu0 %v350
    %v352 = vpop.xlane.xlu0 %351
    %v353 = vsel %vm77, %v331, 0.0
    %354 = vadd.xlane.f32.xlu0 %v353
    %v355 = vpop.xlane.xlu0 %354
    %v356 = vrcp.pop %v334
    %v357 = vmul.f32 %v334, %v356
    %v358 = vsub.f32 1.0, %v357
    %v359 = vmul.f32 %v356, %v358
    %v360 = vadd.f32 %v356, %v359
    %vm361 = vweird.f32 %v334
    %vm362 = vweird.f32 %v356
    %vm363 = vmor %vm361, %vm362
    %v364 = vsel %vm363, %v356, %v360
    %v365 = vand.u32 2147483647, %v334
    %vm366 = vcmp.eq.f32.partialorder %v365, 8.507059e+37
    %v367 = vand.u32 %v334, 2147483648
    %v368 = vor.u32 1.1754944e-38, %v367
    %v369 = vsel %vm366, %v368, %v364
    %v370 = vmul.f32 %v317, %v369
    %v371 = vrcp.pop %v337
    %v372 = vmul.f32 %v337, %v371
    %v373 = vsub.f32 1.0, %v372
    %v374 = vmul.f32 %v371, %v373
    %v375 = vadd.f32 %v371, %v374
    %vm376 = vweird.f32 %v337
    %vm377 = vweird.f32 %v371
    %vm378 = vmor %vm376, %vm377
    %v379 = vsel %vm378, %v371, %v375
    %v380 = vand.u32 2147483647, %v337
    %vm381 = vcmp.eq.f32.partialorder %v380, 8.507059e+37
    %v382 = vand.u32 %v337, 2147483648
    %v383 = vor.u32 1.1754944e-38, %v382
    %v384 = vsel %vm381, %v383, %v379
    %v385 = vmul.f32 %v319, %v384
    %v386 = vrcp.pop %v340
    %v387 = vmul.f32 %v340, %v386
    %v388 = vsub.f32 1.0, %v387
    %v389 = vmul.f32 %v386, %v388
    %v390 = vadd.f32 %v386, %v389
    %vm391 = vweird.f32 %v340
    %vm392 = vweird.f32 %v386
    %vm393 = vmor %vm391, %vm392
    %v394 = vsel %vm393, %v386, %v390
    %v395 = vand.u32 2147483647, %v340
    %vm396 = vcmp.eq.f32.partialorder %v395, 8.507059e+37
    %v397 = vand.u32 %v340, 2147483648
    %v398 = vor.u32 1.1754944e-38, %v397
    %v399 = vsel %vm396, %v398, %v394
    %v400 = vmul.f32 %v321, %v399
    %v401 = vrcp.pop %v343
    %v402 = vmul.f32 %v343, %v401
    %v403 = vsub.f32 1.0, %v402
    %v404 = vmul.f32 %v401, %v403
    %v405 = vadd.f32 %v401, %v404
    %vm406 = vweird.f32 %v343
    %vm407 = vweird.f32 %v401
    %vm408 = vmor %vm406, %vm407
    %v409 = vsel %vm408, %v401, %v405
    %v410 = vand.u32 2147483647, %v343
    %vm411 = vcmp.eq.f32.partialorder %v410, 8.507059e+37
    %v412 = vand.u32 %v343, 2147483648
    %v413 = vor.u32 1.1754944e-38, %v412
    %v414 = vsel %vm411, %v413, %v409
    %v415 = vmul.f32 %v323, %v414
    %v416 = vrcp.pop %v346
    %v417 = vmul.f32 %v346, %v416
    %v418 = vsub.f32 1.0, %v417
    %v419 = vmul.f32 %v416, %v418
    %v420 = vadd.f32 %v416, %v419
    %vm421 = vweird.f32 %v346
    %vm422 = vweird.f32 %v416
    %vm423 = vmor %vm421, %vm422
    %v424 = vsel %vm423, %v416, %v420
    %v425 = vand.u32 2147483647, %v346
    %vm426 = vcmp.eq.f32.partialorder %v425, 8.507059e+37
    %v427 = vand.u32 %v346, 2147483648
    %v428 = vor.u32 1.1754944e-38, %v427
    %v429 = vsel %vm426, %v428, %v424
    %v430 = vmul.f32 %v325, %v429
    %v431 = vrcp.pop %v349
    %v432 = vmul.f32 %v349, %v431
    %v433 = vsub.f32 1.0, %v432
    %v434 = vmul.f32 %v431, %v433
    %v435 = vadd.f32 %v431, %v434
    %vm436 = vweird.f32 %v349
    %vm437 = vweird.f32 %v431
    %vm438 = vmor %vm436, %vm437
    %v439 = vsel %vm438, %v431, %v435
    %v440 = vand.u32 2147483647, %v349
    %vm441 = vcmp.eq.f32.partialorder %v440, 8.507059e+37
    %v442 = vand.u32 %v349, 2147483648
    %v443 = vor.u32 1.1754944e-38, %v442
    %v444 = vsel %vm441, %v443, %v439
    %v445 = vmul.f32 %v327, %v444
    %v446 = vrcp.pop %v352
    %v447 = vmul.f32 %v352, %v446
    %v448 = vsub.f32 1.0, %v447
    %v449 = vmul.f32 %v446, %v448
    %v450 = vadd.f32 %v446, %v449
    %vm451 = vweird.f32 %v352
    %vm452 = vweird.f32 %v446
    %vm453 = vmor %vm451, %vm452
    %v454 = vsel %vm453, %v446, %v450
    %v455 = vand.u32 2147483647, %v352
    %vm456 = vcmp.eq.f32.partialorder %v455, 8.507059e+37
    %v457 = vand.u32 %v352, 2147483648
    %v458 = vor.u32 1.1754944e-38, %v457
    %v459 = vsel %vm456, %v458, %v454
    %v460 = vmul.f32 %v329, %v459
    %v461 = vrcp.pop %v355
    %v462 = vmul.f32 %v355, %v461
    %v463 = vsub.f32 1.0, %v462
    %v464 = vmul.f32 %v461, %v463
    %v465 = vadd.f32 %v461, %v464
    %vm466 = vweird.f32 %v355
    %vm467 = vweird.f32 %v461
    %vm468 = vmor %vm466, %vm467
    %v469 = vsel %vm468, %v461, %v465
    %v470 = vand.u32 2147483647, %v355
    %vm471 = vcmp.eq.f32.partialorder %v470, 8.507059e+37
    %v472 = vand.u32 %v355, 2147483648
    %v473 = vor.u32 1.1754944e-38, %v472
    %v474 = vsel %vm471, %v473, %v469
    %v475 = vmul.f32 %v331, %v474
    %476 = vrot.lane.b32.xlu0 %v56, 64
    %v477 = vpop.permute.xlu0 %476
    %v480 = vsel %vm77, %v370, 0
    %482 = vmatpush.msra.mxu0 0.0
    %483 = vmatpush.msra.mxu0 0.0
    %484 = vmatpush.msra.mxu0 0.0
    %485 = vmatpush.msra.mxu0 0.0
    %486 = vmatpush.msra.mxu0 0.0
    %487 = vmatpush.msra.mxu0 0.0
    %488 = vmatpush.msra.mxu0 0.0
    %489 = vmatpush.msra.mxu0 0.0
    %490 = vmatpush.msra.mxu0 0.0
    %491 = vmatpush.msra.mxu0 0.0
    %492 = vmatpush.msra.mxu0 0.0
    %493 = vmatpush.msra.mxu0 0.0
    %494 = vmatpush.msra.mxu0 0.0
    %495 = vmatpush.msra.mxu0 0.0
    %496 = vmatpush.msra.mxu0 0.0
    %497 = vmatpush.msra.mxu0 %v477
    %498 = vmatmul.f32.gmra.mxu0 %v480
    %v499 = vpop.f32.mrf.mxu0
    %v500 = vadd.f32 0.0, %v499
    %501 = vdwg.mxu0
    %502 = vrot.lane.b32.xlu0 %v59, 64
    %v503 = vpop.permute.xlu0 %502
    %v506 = vsel %vm77, %v385, 0
    %508 = vmatpush.msra.mxu0 0.0
    %509 = vmatpush.msra.mxu0 0.0
    %510 = vmatpush.msra.mxu0 0.0
    %511 = vmatpush.msra.mxu0 0.0
    %512 = vmatpush.msra.mxu0 0.0
    %513 = vmatpush.msra.mxu0 0.0
    %514 = vmatpush.msra.mxu0 0.0
    %515 = vmatpush.msra.mxu0 0.0
    %516 = vmatpush.msra.mxu0 0.0
    %517 = vmatpush.msra.mxu0 0.0
    %518 = vmatpush.msra.mxu0 0.0
    %519 = vmatpush.msra.mxu0 0.0
    %520 = vmatpush.msra.mxu0 0.0
    %521 = vmatpush.msra.mxu0 0.0
    %522 = vmatpush.msra.mxu0 0.0
    %523 = vmatpush.msra.mxu0 %v503
    %524 = vmatmul.f32.gmra.mxu0 %v506
    %v525 = vpop.f32.mrf.mxu0
    %v526 = vadd.f32 0.0, %v525
    %527 = vdwg.mxu0
    %528 = vrot.lane.b32.xlu0 %v64, 64
    %v529 = vpop.permute.xlu0 %528
    %v532 = vsel %vm77, %v400, 0
    %534 = vmatpush.msra.mxu0 0.0
    %535 = vmatpush.msra.mxu0 0.0
    %536 = vmatpush.msra.mxu0 0.0
    %537 = vmatpush.msra.mxu0 0.0
    %538 = vmatpush.msra.mxu0 0.0
    %539 = vmatpush.msra.mxu0 0.0
    %540 = vmatpush.msra.mxu0 0.0
    %541 = vmatpush.msra.mxu0 0.0
    %542 = vmatpush.msra.mxu0 0.0
    %543 = vmatpush.msra.mxu0 0.0
    %544 = vmatpush.msra.mxu0 0.0
    %545 = vmatpush.msra.mxu0 0.0
    %546 = vmatpush.msra.mxu0 0.0
    %547 = vmatpush.msra.mxu0 0.0
    %548 = vmatpush.msra.mxu0 0.0
    %549 = vmatpush.msra.mxu0 %v529
    %550 = vmatmul.f32.gmra.mxu0 %v532
    %v551 = vpop.f32.mrf.mxu0
    %v552 = vadd.f32 0.0, %v551
    %553 = vdwg.mxu0
    %554 = vrot.lane.b32.xlu0 %v66, 64
    %v555 = vpop.permute.xlu0 %554
    %v558 = vsel %vm77, %v415, 0
    %560 = vmatpush.msra.mxu0 0.0
    %561 = vmatpush.msra.mxu0 0.0
    %562 = vmatpush.msra.mxu0 0.0
    %563 = vmatpush.msra.mxu0 0.0
    %564 = vmatpush.msra.mxu0 0.0
    %565 = vmatpush.msra.mxu0 0.0
    %566 = vmatpush.msra.mxu0 0.0
    %567 = vmatpush.msra.mxu0 0.0
    %568 = vmatpush.msra.mxu0 0.0
    %569 = vmatpush.msra.mxu0 0.0
    %570 = vmatpush.msra.mxu0 0.0
    %571 = vmatpush.msra.mxu0 0.0
    %572 = vmatpush.msra.mxu0 0.0
    %573 = vmatpush.msra.mxu0 0.0
    %574 = vmatpush.msra.mxu0 0.0
    %575 = vmatpush.msra.mxu0 %v555
    %576 = vmatmul.f32.gmra.mxu0 %v558
    %v577 = vpop.f32.mrf.mxu0
    %v578 = vadd.f32 0.0, %v577
    %579 = vdwg.mxu0
    %580 = vrot.lane.b32.xlu0 %v68, 64
    %v581 = vpop.permute.xlu0 %580
    %v584 = vsel %vm77, %v430, 0
    %586 = vmatpush.msra.mxu0 0.0
    %587 = vmatpush.msra.mxu0 0.0
    %588 = vmatpush.msra.mxu0 0.0
    %589 = vmatpush.msra.mxu0 0.0
    %590 = vmatpush.msra.mxu0 0.0
    %591 = vmatpush.msra.mxu0 0.0
    %592 = vmatpush.msra.mxu0 0.0
    %593 = vmatpush.msra.mxu0 0.0
    %594 = vmatpush.msra.mxu0 0.0
    %595 = vmatpush.msra.mxu0 0.0
    %596 = vmatpush.msra.mxu0 0.0
    %597 = vmatpush.msra.mxu0 0.0
    %598 = vmatpush.msra.mxu0 0.0
    %599 = vmatpush.msra.mxu0 0.0
    %600 = vmatpush.msra.mxu0 0.0
    %601 = vmatpush.msra.mxu0 %v581
    %602 = vmatmul.f32.gmra.mxu0 %v584
    %v603 = vpop.f32.mrf.mxu0
    %v604 = vadd.f32 0.0, %v603
    %605 = vdwg.mxu0
    %606 = vrot.lane.b32.xlu0 %v70, 64
    %v607 = vpop.permute.xlu0 %606
    %v610 = vsel %vm77, %v445, 0
    %612 = vmatpush.msra.mxu0 0.0
    %613 = vmatpush.msra.mxu0 0.0
    %614 = vmatpush.msra.mxu0 0.0
    %615 = vmatpush.msra.mxu0 0.0
    %616 = vmatpush.msra.mxu0 0.0
    %617 = vmatpush.msra.mxu0 0.0
    %618 = vmatpush.msra.mxu0 0.0
    %619 = vmatpush.msra.mxu0 0.0
    %620 = vmatpush.msra.mxu0 0.0
    %621 = vmatpush.msra.mxu0 0.0
    %622 = vmatpush.msra.mxu0 0.0
    %623 = vmatpush.msra.mxu0 0.0
    %624 = vmatpush.msra.mxu0 0.0
    %625 = vmatpush.msra.mxu0 0.0
    %626 = vmatpush.msra.mxu0 0.0
    %627 = vmatpush.msra.mxu0 %v607
    %628 = vmatmul.f32.gmra.mxu0 %v610
    %v629 = vpop.f32.mrf.mxu0
    %v630 = vadd.f32 0.0, %v629
    %631 = vdwg.mxu0
    %632 = vrot.lane.b32.xlu0 %v72, 64
    %v633 = vpop.permute.xlu0 %632
    %v636 = vsel %vm77, %v460, 0
    %638 = vmatpush.msra.mxu0 0.0
    %639 = vmatpush.msra.mxu0 0.0
    %640 = vmatpush.msra.mxu0 0.0
    %641 = vmatpush.msra.mxu0 0.0
    %642 = vmatpush.msra.mxu0 0.0
    %643 = vmatpush.msra.mxu0 0.0
    %644 = vmatpush.msra.mxu0 0.0
    %645 = vmatpush.msra.mxu0 0.0
    %646 = vmatpush.msra.mxu0 0.0
    %647 = vmatpush.msra.mxu0 0.0
    %648 = vmatpush.msra.mxu0 0.0
    %649 = vmatpush.msra.mxu0 0.0
    %650 = vmatpush.msra.mxu0 0.0
    %651 = vmatpush.msra.mxu0 0.0
    %652 = vmatpush.msra.mxu0 0.0
    %653 = vmatpush.msra.mxu0 %v633
    %654 = vmatmul.f32.gmra.mxu0 %v636
    %v655 = vpop.f32.mrf.mxu0
    %v656 = vadd.f32 0.0, %v655
    %657 = vdwg.mxu0
    %658 = vrot.lane.b32.xlu0 %v74, 64
    %v659 = vpop.permute.xlu0 %658
    %v662 = vsel %vm77, %v475, 0
    %664 = vmatpush.msra.mxu0 0.0
    %665 = vmatpush.msra.mxu0 0.0
    %666 = vmatpush.msra.mxu0 0.0
    %667 = vmatpush.msra.mxu0 0.0
    %668 = vmatpush.msra.mxu0 0.0
    %669 = vmatpush.msra.mxu0 0.0
    %670 = vmatpush.msra.mxu0 0.0
    %671 = vmatpush.msra.mxu0 0.0
    %672 = vmatpush.msra.mxu0 0.0
    %673 = vmatpush.msra.mxu0 0.0
    %674 = vmatpush.msra.mxu0 0.0
    %675 = vmatpush.msra.mxu0 0.0
    %676 = vmatpush.msra.mxu0 0.0
    %677 = vmatpush.msra.mxu0 0.0
    %678 = vmatpush.msra.mxu0 0.0
    %679 = vmatpush.msra.mxu0 %v659
    %680 = vmatmul.f32.gmra.mxu0 %v662
    %v681 = vpop.f32.mrf.mxu0
    %v682 = vadd.f32 0.0, %v681
    %683 = vdwg.mxu0
    %686 = vrot.lane.b32.xlu0 %v552, 8
    %v687 = vpop.permute.xlu0 %686
    %688 = vrot.lane.b32.xlu0 %v578, 8
    %v689 = vpop.permute.xlu0 %688
    %694 = vrot.lane.b32.xlu0 %v604, 16
    %v695 = vpop.permute.xlu0 %694
    %696 = vrot.lane.b32.xlu0 %v630, 16
    %v697 = vpop.permute.xlu0 %696
    %702 = vrot.lane.b32.xlu0 %v656, 24
    %v703 = vpop.permute.xlu0 %702
    %704 = vrot.lane.b32.xlu0 %v682, 24
    %v705 = vpop.permute.xlu0 %704
    %v708 = vsel %vm77, %v500, %v687
    %v709 = vsel %vm77, %v526, %v689
    %vm710 = vcmask 130048
    %v711 = vsel %vm710, %v708, %v695
    %v712 = vsel %vm710, %v709, %v697
    %vm713 = vcmask 195584
    %v714 = vsel %vm713, %v711, %v703
    %v715 = vsel %vm713, %v712, %v705
    %v716 = vld [vmem:[%s3] sm:$0xff]
    %v717 = vld [vmem:[%s3 + $0x8] sm:$0xff]
    %v718 = vld [vmem:[%s3 + $0x10] sm:$0xff]
    %v719 = vld [vmem:[%s3 + $0x18] sm:$0xff]
    %v720 = vld [vmem:[%s4] sm:$0x1]
    %v722 = vperm.slane %v720, 0
    %v725 = vsel %vm31, %v714, 0
    %v728 = vsel %vm31, %v715, 0
    %730 = vmatpush.msra.mxu0 0.0
    %731 = vmatpush.msra.mxu0 0.0
    %732 = vmatpush.msra.mxu0 0.0
    %733 = vmatpush.msra.mxu0 0.0
    %734 = vmatpush.msra.mxu0 0.0
    %735 = vmatpush.msra.mxu0 0.0
    %736 = vmatpush.msra.mxu0 0.0
    %737 = vmatpush.msra.mxu0 0.0
    %738 = vmatpush.msra.mxu0 0.0
    %739 = vmatpush.msra.mxu0 0.0
    %740 = vmatpush.msra.mxu0 0.0
    %741 = vmatpush.msra.mxu0 0.0
    %742 = vmatpush.msra.mxu0 %v719
    %743 = vmatpush.msra.mxu0 %v718
    %744 = vmatpush.msra.mxu0 %v717
    %745 = vmatpush.msra.mxu0 %v716
    %746 = vmatmul.f32.gmra.mxu0 %v725
    %v747 = vpop.f32.mrf.mxu0
    %v748 = vadd.f32 %v722, %v747
    %749 = vmatmul.f32.gmra.mxu0 %v728
    %v750 = vpop.f32.mrf.mxu0
    %v751 = vadd.f32 %v722, %v750
    %752 = vdwg.mxu0
    %753 = vst.msk [vmem:[#allocation2] sm:$0xff] %vm31, %v748
    %754 = vst.msk [vmem:[#allocation2 + $0x8] sm:$0xff] %vm31, %v751
    // Predicated region
    $region22: #{mhsa_pallas.1} parent=1 // pred_check
      _
    $region23: #{mhsa_pallas.1} parent=1 // pred_check_branch
      %756 = sbr.rel (0) target = $region25
    $region24: #{mhsa_pallas.1} parent=1 // pred_region
      %758 = vsyncadd [#allocation3], 0
      %s759 = sshll.u32 [#allocation2], 4
      %s760 = int_to_ptr.vmem [resolvable:$true] %s759
      %s761 = sshll.u32 %s5, 4
      %s762 = int_to_ptr.hbm [resolvable:$true] %s761
      %767 = dma.vmem_to_hbm [thread:$0]  %s760, 256, %s762, [#allocation3], 128, 128, 8
    $region25: #{mhsa_pallas.1} parent=1 // pred_fallthru
      _
    // Predicated region
    $region26: #{mhsa_pallas.1} parent=1 // pred_check
      _
    $region27: #{mhsa_pallas.1} parent=1 // pred_check_branch
      %769 = sbr.rel (0) target = $region29
    $region28: #{mhsa_pallas.1} parent=1 // pred_region
      %771 = dma.done [#allocation3], 256
    $region29: #{mhsa_pallas.1} parent=1 // pred_fallthru
      _
    %772 = vsyncpa [#allocation3], 1

</llo_original>
